<compile_context>
chip_gen: v6e
topology: v6e:2x2x1
jax: 0.10.0
libtpu: 0.0.40
codegen_flags: <defaults>
</compile_context>

<pallas_src>
import functools

import jax
import jax.numpy as jnp
from jax.experimental import pallas as pl
from jax.experimental.pallas import tpu as pltpu


def _round_up(n, m):
    return ((n + m - 1) // m) * m


def encoder_kernel(x_ref, w1_ref, b1_ref, w2_ref, b2_ref, o_ref):
    # ---- fc1 + ReLU (MXU): h = relu(x @ W1 + b1) -> (bb, hid_pad) ----------
    h = jnp.dot(x_ref[...], w1_ref[...],
                preferred_element_type=jnp.float32)          # (bb, hid_pad)
    h = jnp.maximum(h + b1_ref[...], 0.0)                    # b1 (1, hid_pad) broadcasts

    # ---- fc2 (MXU): y = h @ W2 + b2 -> (bb, out_dim) ------------------------
    y = jnp.dot(h, w2_ref[...],
                preferred_element_type=jnp.float32) + b2_ref[...]

    # ---- exp0_poincare: tanh(||y||) * y / ||y||  (norm over feature dim) ----
    sq = jnp.sum(y * y, axis=-1, keepdims=True)              # (bb, 1)
    inv = jax.lax.rsqrt(jnp.maximum(sq, 1e-24))               # 1/||y||          (EUP)
    norm = sq * inv                                           # ||y||
    scale = jnp.tanh(norm) * inv                              # tanh(||y||)/||y|| (EUP)
    o_ref[...] = (y * scale).astype(o_ref.dtype)


@functools.partial(jax.jit, static_argnames=("block_b",))
def encoder_forward(x, w1, b1, w2, b2, *, block_b=4096):
    """x:(B,in) f32, w1:(in,hid), b1:(hid,) or (1,hid), w2:(hid,out), b2:(out,) or (1,out)."""
    B, in_dim = x.shape
    hid = w1.shape[1]
    out_dim = w2.shape[1]

    # ---- wrapper-side layout plumbing (small pads only; no x transpose) -----
    hid_pad = _round_up(hid, 128)                 # 200 -> 256: packed vregs, aligned K/N
    B128 = _round_up(B, 128)
    if B128 > block_b:
        # Large batch: big tiles, but keep >= 2 grid steps so v7x megacore
        # ("parallel") can shard the grid across its 2 TensorCores.
        bb = min(block_b, _round_up((B128 + 1) // 2, 128))
    else:
        bb = B128
    B_pad = _round_up(B, bb)

    x_pad = jnp.pad(x, ((0, B_pad - B), (0, 0)))                        # (B_pad, in)
    w1p = jnp.pad(w1, ((0, 0), (0, hid_pad - hid)))                     # (in, hid_pad)
    b1p = jnp.pad(b1.reshape(1, -1), ((0, 0), (0, hid_pad - hid)))      # (1, hid_pad)
    w2p = jnp.pad(w2, ((0, hid_pad - hid), (0, 0)))                     # (hid_pad, out)
    b2r = b2.reshape(1, -1)                                             # (1, out)

    grid = (B_pad // bb,)
    cost = pl.CostEstimate(
        flops=2 * B_pad * (in_dim * hid_pad + hid_pad * out_dim),
        transcendentals=2 * B_pad,  # tanh + rsqrt per row
        bytes_accessed=4 * (B_pad * (in_dim + out_dim)
                            + in_dim * hid_pad + hid_pad
                            + hid_pad * out_dim + out_dim),
    )

    out = pl.pallas_call(
        encoder_kernel,
        out_shape=jax.ShapeDtypeStruct((B_pad, out_dim), jnp.float32),
        grid_spec=pl.GridSpec(
            grid=grid,
            in_specs=[
                pl.BlockSpec((bb, in_dim), lambda i: (i, 0)),          # x batch tile
                pl.BlockSpec((in_dim, hid_pad), lambda i: (0, 0)),     # W1 (resident)
                pl.BlockSpec((1, hid_pad), lambda i: (0, 0)),          # b1
                pl.BlockSpec((hid_pad, out_dim), lambda i: (0, 0)),    # W2
                pl.BlockSpec((1, out_dim), lambda i: (0, 0)),          # b2
            ],
            out_specs=pl.BlockSpec((bb, out_dim), lambda i: (i, 0)),
        ),
        compiler_params=pltpu.CompilerParams(
            dimension_semantics=("parallel",),
        ),
        cost_estimate=cost,
    )(x_pad, w1p, b1p, w2p, b2r)

    return out[:B]                                                     # (B, out_dim)


def encoder_reference(x, w1, b1, w2, b2):
    h = jnp.maximum(x @ w1 + b1.reshape(1, -1), 0.0)
    y = h @ w2 + b2.reshape(1, -1)
    norm = jnp.maximum(jnp.sqrt(jnp.sum(y * y, axis=-1, keepdims=True)), 1e-12)
    return jnp.tanh(norm) * y / norm


if __name__ == "__main__":
    # module constants: input_dim=50, hidden_dim=200, output_dim=2
    input_dim, hidden_dim, output_dim = 50, 200, 2

    key = jax.random.PRNGKey(0)
    kx, kw1, kb1, kw2, kb2 = jax.random.split(key, 5)

    # Deterministic parameter init (uniform, roughly matching nn.Linear fan-in scaling).
    s1 = 1.0 / jnp.sqrt(jnp.float32(input_dim))
    s2 = 1.0 / jnp.sqrt(jnp.float32(hidden_dim))
    w1 = jax.random.uniform(kw1, (input_dim, hidden_dim), jnp.float32, -s1, s1)
    b1 = jax.random.uniform(kb1, (hidden_dim,), jnp.float32, -s1, s1)
    w2 = jax.random.uniform(kw2, (hidden_dim, output_dim), jnp.float32, -s2, s2)
    b2 = jax.random.uniform(kb2, (output_dim,), jnp.float32, -s2, s2)

    # Small primary test (batch=16, single grid step).
    batch = 16
    x = jax.random.normal(kx, (batch, input_dim), dtype=jnp.float32)
    out = jax.block_until_ready(encoder_forward(x, w1, b1, w2, b2))
    ref = encoder_reference(x, w1, b1, w2, b2)
    assert out.shape == (batch, output_dim)
    assert jnp.allclose(out, ref, atol=2e-5, rtol=1e-5), "mismatch vs reference"
    # Poincare-ball outputs: norm <= 1 (up to f32 tanh saturation).
    assert bool(jnp.all(jnp.sum(out * out, axis=-1) <= 1.0 + 1e-6))

    # Secondary test: exercises batch padding and a >1-step grid (block_b override).
    batch2 = 300
    x2 = jax.random.normal(kx, (batch2, input_dim), dtype=jnp.float32)
    out2 = jax.block_until_ready(encoder_forward(x2, w1, b1, w2, b2, block_b=128))
    ref2 = encoder_reference(x2, w1, b1, w2, b2)
    assert out2.shape == (batch2, output_dim)
    assert jnp.allclose(out2, ref2, atol=2e-5, rtol=1e-5), "mismatch vs reference (grid>1)"

    print("KERNEL_OK")
</pallas_src>

<mosaic_0001>
module attributes {stable_mosaic.version = 11 : i64} {
  func.func @encoder_kernel(%arg0: i32, %arg1: memref<128x50xf32, #tpu.memory_space<vmem>>, %arg2: memref<50x256xf32, #tpu.memory_space<vmem>>, %arg3: memref<1x256xf32, #tpu.memory_space<vmem>>, %arg4: memref<256x2xf32, #tpu.memory_space<vmem>>, %arg5: memref<1x2xf32, #tpu.memory_space<vmem>>, %arg6: memref<128x2xf32, #tpu.memory_space<vmem>>) attributes {dimension_semantics = [#tpu.dimension_semantics<parallel>], iteration_bounds = array<i64: 1>, scalar_prefetch = 0 : i64, scratch_operands = 0 : i64, tpu.core_type = #tpu.core_type<tc>, window_params = [{transform_indices = @transform_0, window_bounds = array<i64: 128, 50>}, {pipeline_mode = #tpu.pipeline_mode<synchronous>, transform_indices = @transform_1, window_bounds = array<i64: 50, 256>}, {pipeline_mode = #tpu.pipeline_mode<synchronous>, transform_indices = @transform_2, window_bounds = array<i64: 1, 256>}, {pipeline_mode = #tpu.pipeline_mode<synchronous>, transform_indices = @transform_3, window_bounds = array<i64: 256, 2>}, {pipeline_mode = #tpu.pipeline_mode<synchronous>, transform_indices = @transform_4, window_bounds = array<i64: 1, 2>}, {transform_indices = @transform_5, window_bounds = array<i64: 128, 2>}]} {
    %c0 = arith.constant 0 : index
    %c0_0 = arith.constant 0 : index
    %0 = vector.load %arg1[%c0, %c0_0] : memref<128x50xf32, #tpu.memory_space<vmem>>, vector<128x50xf32>
    %c0_1 = arith.constant 0 : index
    %c0_2 = arith.constant 0 : index
    %1 = vector.load %arg2[%c0_1, %c0_2] : memref<50x256xf32, #tpu.memory_space<vmem>>, vector<50x256xf32>
    %cst = arith.constant dense<0.000000e+00> : vector<128x256xf32>
    %2 = tpu.matmul %0, %1, %cst {dimension_numbers = #tpu.dot_dimension_numbers<[1], [0], [0], [1], [0, 0, 1, 1], [], []>} : vector<128x50xf32>, vector<50x256xf32>, vector<128x256xf32> -> vector<128x256xf32>
    %c0_3 = arith.constant 0 : index
    %c0_4 = arith.constant 0 : index
    %3 = vector.load %arg3[%c0_3, %c0_4] : memref<1x256xf32, #tpu.memory_space<vmem>>, vector<1x256xf32>
    %4 = vector.broadcast %3 : vector<1x256xf32> to vector<128x256xf32>
    %5 = arith.addf %2, %4 : vector<128x256xf32>
    %cst_5 = arith.constant 0.000000e+00 : f32
    %6 = vector.broadcast %cst_5 : f32 to vector<128x256xf32>
    %7 = arith.maximumf %5, %6 : vector<128x256xf32>
    %c0_6 = arith.constant 0 : index
    %c0_7 = arith.constant 0 : index
    %8 = vector.load %arg4[%c0_6, %c0_7] : memref<256x2xf32, #tpu.memory_space<vmem>>, vector<256x2xf32>
    %cst_8 = arith.constant dense<0.000000e+00> : vector<128x2xf32>
    %9 = tpu.matmul %7, %8, %cst_8 {dimension_numbers = #tpu.dot_dimension_numbers<[1], [0], [0], [1], [0, 0, 1, 1], [], []>} : vector<128x256xf32>, vector<256x2xf32>, vector<128x2xf32> -> vector<128x2xf32>
    %c0_9 = arith.constant 0 : index
    %c0_10 = arith.constant 0 : index
    %10 = vector.load %arg5[%c0_9, %c0_10] : memref<1x2xf32, #tpu.memory_space<vmem>>, vector<1x2xf32>
    %11 = vector.broadcast %10 : vector<1x2xf32> to vector<128x2xf32>
    %12 = arith.addf %9, %11 : vector<128x2xf32>
    %13 = arith.mulf %12, %12 : vector<128x2xf32>
    %cst_11 = arith.constant dense<0.000000e+00> : vector<128xf32>
    %14 = vector.multi_reduction <add>, %13, %cst_11 [1] : vector<128x2xf32> to vector<128xf32>
    %15 = vector.shape_cast %14 : vector<128xf32> to vector<128x1xf32>
    %cst_12 = arith.constant 1.000000e-24 : f32
    %16 = vector.broadcast %cst_12 : f32 to vector<128x1xf32>
    %17 = arith.maximumf %15, %16 : vector<128x1xf32>
    %18 = math.rsqrt %17 : vector<128x1xf32>
    %19 = arith.mulf %15, %18 : vector<128x1xf32>
    %20 = math.tanh %19 : vector<128x1xf32>
    %21 = arith.mulf %20, %18 : vector<128x1xf32>
    %22 = vector.broadcast %21 : vector<128x1xf32> to vector<128x2xf32>
    %23 = arith.mulf %12, %22 : vector<128x2xf32>
    %c0_13 = arith.constant 0 : index
    %c0_14 = arith.constant 0 : index
    %24 = vector.load %arg6[%c0_13, %c0_14] : memref<128x2xf32, #tpu.memory_space<vmem>>, vector<128x2xf32>
    tpu.vector_store %arg6[%c0_13, %c0_14], %23 {strides = array<i32>} : memref<128x2xf32, #tpu.memory_space<vmem>>, vector<128x2xf32>,
    return
  }
  func.func @transform_0(%arg0: i32) -> (i32, i32) {
    %c0_i32 = arith.constant 0 : i32
    %c0_i32_0 = arith.constant 0 : i32
    return %arg0, %c0_i32 : i32, i32
  }
  func.func @transform_1(%arg0: i32) -> (i32, i32) {
    %c0_i32 = arith.constant 0 : i32
    %c0_i32_0 = arith.constant 0 : i32
    %c0_i32_1 = arith.constant 0 : i32
    return %c0_i32, %c0_i32_0 : i32, i32
  }
  func.func @transform_2(%arg0: i32) -> (i32, i32) {
    %c0_i32 = arith.constant 0 : i32
    %c0_i32_0 = arith.constant 0 : i32
    %c0_i32_1 = arith.constant 0 : i32
    return %c0_i32, %c0_i32_0 : i32, i32
  }
  func.func @transform_3(%arg0: i32) -> (i32, i32) {
    %c0_i32 = arith.constant 0 : i32
    %c0_i32_0 = arith.constant 0 : i32
    %c0_i32_1 = arith.constant 0 : i32
    return %c0_i32, %c0_i32_0 : i32, i32
  }
  func.func @transform_4(%arg0: i32) -> (i32, i32) {
    %c0_i32 = arith.constant 0 : i32
    %c0_i32_0 = arith.constant 0 : i32
    %c0_i32_1 = arith.constant 0 : i32
    return %c0_i32, %c0_i32_0 : i32, i32
  }
  func.func @transform_5(%arg0: i32) -> (i32, i32) {
    %c0_i32 = arith.constant 0 : i32
    %c0_i32_0 = arith.constant 0 : i32
    return %arg0, %c0_i32 : i32, i32
  }
}

</mosaic_0001>

<llo_original>
// kernel: encoder_forward.1
$region0: #{encoder_forward.1}
  #allocation0 [shape = 'u32[]', space=smem, size = 0x4, offset = 0x4, fixed_abs, tag = 'smem constant byte address 0x4 - core index']
  #allocation1 [shape = 'u32[144,128]{1,0:T(1,128)}', space=vmem, size = 0x12000, scoped, tag = 'internal scratch']
  %s0 = inlined_call_operand.vmem [shape: f32[128,50], index: 0, kind: input, shape index: {}]
  %s1 = inlined_call_operand.vmem [shape: f32[50,256], index: 1, kind: input, shape index: {}]
  %s2 = inlined_call_operand.vmem [shape: f32[1,256], index: 2, kind: input, shape index: {}]
  %s3 = inlined_call_operand.vmem [shape: f32[256,2], index: 3, kind: input, shape index: {}]
  %s4 = inlined_call_operand.vmem [shape: f32[1,2], index: 4, kind: input, shape index: {}]
  %s5 = inlined_call_operand.vmem [shape: f32[128,2], index: 5, kind: output, shape index: {}]
  %s6 = sld [smem:[#allocation0]]
  $region30: #{encoder_forward.1} parent=0
    _
  %s8 = ssub.s32 1, %s6
  %s9 = scalar_select 0, %s8, %s6
  // Predicated region
  $region2: #{encoder_forward.1} parent=0 // pred_check
    _
  $region3: #{encoder_forward.1} parent=0 // pred_check_branch
    %11 = sbr.rel (0) target = $region5
  $region4: #{encoder_forward.1} parent=0 // pred_region
    _
  $region5: #{encoder_forward.1} parent=0 // pred_fallthru
    _
  // Predicated region
  $region6: #{encoder_forward.1} parent=0 // pred_check
    _
  $region7: #{encoder_forward.1} parent=0 // pred_check_branch
    %13 = sbr.rel (0) target = $region9
  $region8: #{encoder_forward.1} parent=0 // pred_region
    _
  $region9: #{encoder_forward.1} parent=0 // pred_fallthru
    _
  // Predicated region
  $region10: #{encoder_forward.1} parent=0 // pred_check
    _
  $region11: #{encoder_forward.1} parent=0 // pred_check_branch
    %15 = sbr.rel (0) target = $region13
  $region12: #{encoder_forward.1} parent=0 // pred_region
    _
  $region13: #{encoder_forward.1} parent=0 // pred_fallthru
    _
  // Predicated region
  $region14: #{encoder_forward.1} parent=0 // pred_check
    _
  $region15: #{encoder_forward.1} parent=0 // pred_check_branch
    %17 = sbr.rel (0) target = $region17
  $region16: #{encoder_forward.1} parent=0 // pred_region
    _
  $region17: #{encoder_forward.1} parent=0 // pred_fallthru
    _
  // Predicated region
  $region18: #{encoder_forward.1} parent=0 // pred_check
    _
  $region19: #{encoder_forward.1} parent=0 // pred_check_branch
    %19 = sbr.rel (0) target = $region21
  $region20: #{encoder_forward.1} parent=0 // pred_region
    _
  $region21: #{encoder_forward.1} parent=0 // pred_fallthru
    _
  %v20 = vld [vmem:[%s0] sm:$0xff]
  %v21 = vld [vmem:[%s0 + $0x8] sm:$0xff]
  %v22 = vld [vmem:[%s0 + $0x10] sm:$0xff]
  %v23 = vld [vmem:[%s0 + $0x18] sm:$0xff]
  %v24 = vld [vmem:[%s0 + $0x20] sm:$0xff]
  %v25 = vld [vmem:[%s0 + $0x28] sm:$0xff]
  %v26 = vld [vmem:[%s0 + $0x30] sm:$0xff]
  %v27 = vld [vmem:[%s0 + $0x38] sm:$0xff]
  %v28 = vld [vmem:[%s0 + $0x40] sm:$0xff]
  %v29 = vld [vmem:[%s0 + $0x48] sm:$0xff]
  %v30 = vld [vmem:[%s0 + $0x50] sm:$0xff]
  %v31 = vld [vmem:[%s0 + $0x58] sm:$0xff]
  %v32 = vld [vmem:[%s0 + $0x60] sm:$0xff]
  %v33 = vld [vmem:[%s0 + $0x68] sm:$0xff]
  %v34 = vld [vmem:[%s0 + $0x70] sm:$0xff]
  %v35 = vld [vmem:[%s0 + $0x78] sm:$0xff]
  %v36 = vld [vmem:[%s1] sm:$0xff]
  %v37 = vld [vmem:[%s1 + $0x8] sm:$0xff]
  %v38 = vld [vmem:[%s1 + $0x10] sm:$0xff]
  %v39 = vld [vmem:[%s1 + $0x18] sm:$0xff]
  %v40 = vld [vmem:[%s1 + $0x20] sm:$0xff]
  %v41 = vld [vmem:[%s1 + $0x28] sm:$0xff]
  %v42 = vld [vmem:[%s1 + $0x30] sm:$0xff]
  %v43 = vld [vmem:[%s1 + $0x38] sm:$0xff]
  %v44 = vld [vmem:[%s1 + $0x40] sm:$0xff]
  %v45 = vld [vmem:[%s1 + $0x48] sm:$0xff]
  %v46 = vld [vmem:[%s1 + $0x50] sm:$0xff]
  %v47 = vld [vmem:[%s1 + $0x58] sm:$0xff]
  %v48 = vld [vmem:[%s1 + $0x60] sm:$0x3]
  %v49 = vld [vmem:[%s1 + $0x68] sm:$0x3]
  %v50 = vld [vmem:[%s2] sm:$0x3]
  %v52 = vlaneseq
  %v53 = vshrl.u32 %v52, 7
  %v54 = vsub.s32 0, %v53
  %v55 = vrot.slane %v50, %v54
  %v56 = vlaneseq
  %v57 = vshrl.u32 %v56, 7
  %v58 = vsub.s32 1, %v57
  %v59 = vrot.slane %v50, %v58
  %vm62 = vcmask 408576
  %v64 = vsel %vm62, %v20, 0
  %v67 = vsel %vm62, %v21, 0
  %v70 = vsel %vm62, %v22, 0
  %v73 = vsel %vm62, %v23, 0
  %v76 = vsel %vm62, %v24, 0
  %v79 = vsel %vm62, %v25, 0
  %v82 = vsel %vm62, %v26, 0
  %v85 = vsel %vm62, %v27, 0
  %v88 = vsel %vm62, %v28, 0
  %v91 = vsel %vm62, %v29, 0
  %v94 = vsel %vm62, %v30, 0
  %v97 = vsel %vm62, %v31, 0
  %v100 = vsel %vm62, %v32, 0
  %v103 = vsel %vm62, %v33, 0
  %v106 = vsel %vm62, %v34, 0
  %v109 = vsel %vm62, %v35, 0
  %vm111 = vcmask 1041408
  %v113 = vsel %vm111, %v48, 0
  %v116 = vsel %vm111, %v49, 0
  %118 = vmatprep.subr.mxu0 0.0
  %119 = vmatpush1.msra.mxu0 0.0
  %120 = vmatprep.subr.mxu0 0.0
  %121 = vmatpush1.msra.mxu0 0.0
  %122 = vmatprep.subr.mxu0 0.0
  %123 = vmatpush1.msra.mxu0 0.0
  %124 = vmatprep.subr.mxu0 0.0
  %125 = vmatpush1.msra.mxu0 0.0
  %126 = vmatprep.subr.mxu0 0.0
  %127 = vmatpush1.msra.mxu0 0.0
  %128 = vmatprep.subr.mxu0 0.0
  %129 = vmatpush1.msra.mxu0 0.0
  %130 = vmatprep.subr.mxu0 0.0
  %131 = vmatpush1.msra.mxu0 0.0
  %132 = vmatprep.subr.mxu0 0.0
  %133 = vmatpush1.msra.mxu0 0.0
  %134 = vmatprep.subr.mxu0 0.0
  %135 = vmatpush1.msra.mxu0 0.0
  %136 = vmatprep.subr.mxu0 %v116
  %137 = vmatpush1.msra.mxu0 %v113
  %138 = vmatprep.subr.mxu0 %v47
  %139 = vmatpush1.msra.mxu0 %v46
  %140 = vmatprep.subr.mxu0 %v45
  %141 = vmatpush1.msra.mxu0 %v44
  %142 = vmatprep.subr.mxu0 %v43
  %143 = vmatpush1.msra.mxu0 %v42
  %144 = vmatprep.subr.mxu0 %v41
  %145 = vmatpush1.msra.mxu0 %v40
  %146 = vmatprep.subr.mxu0 %v39
  %147 = vmatpush1.msra.mxu0 %v38
  %148 = vmatprep.subr.mxu0 %v37
  %149 = vmatpush1.msra.mxu0 %v36
  %150 = vmatprep.subr.mxu0 0.0
  %151 = vmatpush2.msra.mxu0 0.0
  %152 = vmatprep.subr.mxu0 0.0
  %153 = vmatpush2.msra.mxu0 0.0
  %154 = vmatprep.subr.mxu0 0.0
  %155 = vmatpush2.msra.mxu0 0.0
  %156 = vmatprep.subr.mxu0 0.0
  %157 = vmatpush2.msra.mxu0 0.0
  %158 = vmatprep.subr.mxu0 0.0
  %159 = vmatpush2.msra.mxu0 0.0
  %160 = vmatprep.subr.mxu0 0.0
  %161 = vmatpush2.msra.mxu0 0.0
  %162 = vmatprep.subr.mxu0 0.0
  %163 = vmatpush2.msra.mxu0 0.0
  %164 = vmatprep.subr.mxu0 0.0
  %165 = vmatpush2.msra.mxu0 0.0
  %166 = vmatprep.subr.mxu0 0.0
  %167 = vmatpush2.msra.mxu0 0.0
  %168 = vmatprep.subr.mxu0 0.0
  %169 = vmatpush2.msra.mxu0 0.0
  %170 = vmatprep.subr.mxu0 0.0
  %171 = vmatpush2.msra.mxu0 0.0
  %172 = vmatprep.subr.mxu0 0.0
  %173 = vmatpush2.msra.mxu0 0.0
  %174 = vmatprep.subr.mxu0 0.0
  %175 = vmatpush2.msra.mxu0 0.0
  %176 = vmatprep.subr.mxu0 0.0
  %177 = vmatpush2.msra.mxu0 0.0
  %178 = vmatprep.subr.mxu0 0.0
  %179 = vmatpush2.msra.mxu0 0.0
  %180 = vmatprep.subr.mxu0 0.0
  %181 = vmatpush2.msra.mxu0 0.0
  %182 = vmatprep.mubr.f32.mxu0 0.0
  %183 = vmatmul.mubr.f32.gmra.mxu0 %v64
  %v184 = vpop.f32.mrf.mxu0
  %v185 = vadd.f32 %v55, %v184
  %v186 = vpop.f32.mrf.mxu0
  %v187 = vadd.f32 %v59, %v186
  %188 = vmatprep.mubr.f32.mxu0 0.0
  %189 = vmatmul.mubr.f32.gmra.mxu0 %v67
  %v190 = vpop.f32.mrf.mxu0
  %v191 = vadd.f32 %v55, %v190
  %v192 = vpop.f32.mrf.mxu0
  %v193 = vadd.f32 %v59, %v192
  %194 = vmatprep.mubr.f32.mxu0 0.0
  %195 = vmatmul.mubr.f32.gmra.mxu0 %v70
  %v196 = vpop.f32.mrf.mxu0
  %v197 = vadd.f32 %v55, %v196
  %v198 = vpop.f32.mrf.mxu0
  %v199 = vadd.f32 %v59, %v198
  %200 = vmatprep.mubr.f32.mxu0 0.0
  %201 = vmatmul.mubr.f32.gmra.mxu0 %v73
  %v202 = vpop.f32.mrf.mxu0
  %v203 = vadd.f32 %v55, %v202
  %v204 = vpop.f32.mrf.mxu0
  %v205 = vadd.f32 %v59, %v204
  %206 = vmatprep.mubr.f32.mxu0 0.0
  %207 = vmatmul.mubr.f32.gmra.mxu0 %v76
  %v208 = vpop.f32.mrf.mxu0
  %v209 = vadd.f32 %v55, %v208
  %v210 = vpop.f32.mrf.mxu0
  %v211 = vadd.f32 %v59, %v210
  %212 = vmatprep.mubr.f32.mxu0 0.0
  %213 = vmatmul.mubr.f32.gmra.mxu0 %v79
  %v214 = vpop.f32.mrf.mxu0
  %v215 = vadd.f32 %v55, %v214
  %v216 = vpop.f32.mrf.mxu0
  %v217 = vadd.f32 %v59, %v216
  %218 = vmatprep.mubr.f32.mxu0 0.0
  %219 = vmatmul.mubr.f32.gmra.mxu0 %v82
  %v220 = vpop.f32.mrf.mxu0
  %v221 = vadd.f32 %v55, %v220
  %v222 = vpop.f32.mrf.mxu0
  %v223 = vadd.f32 %v59, %v222
  %224 = vmatprep.mubr.f32.mxu0 0.0
  %225 = vmatmul.mubr.f32.gmra.mxu0 %v85
  %v226 = vpop.f32.mrf.mxu0
  %v227 = vadd.f32 %v55, %v226
  %v228 = vpop.f32.mrf.mxu0
  %v229 = vadd.f32 %v59, %v228
  %230 = vmatprep.mubr.f32.mxu0 0.0
  %231 = vmatmul.mubr.f32.gmra.mxu0 %v88
  %v232 = vpop.f32.mrf.mxu0
  %v233 = vadd.f32 %v55, %v232
  %v234 = vpop.f32.mrf.mxu0
  %v235 = vadd.f32 %v59, %v234
  %236 = vmatprep.mubr.f32.mxu0 0.0
  %237 = vmatmul.mubr.f32.gmra.mxu0 %v91
  %v238 = vpop.f32.mrf.mxu0
  %v239 = vadd.f32 %v55, %v238
  %v240 = vpop.f32.mrf.mxu0
  %v241 = vadd.f32 %v59, %v240
  %242 = vmatprep.mubr.f32.mxu0 0.0
  %243 = vmatmul.mubr.f32.gmra.mxu0 %v94
  %v244 = vpop.f32.mrf.mxu0
  %v245 = vadd.f32 %v55, %v244
  %v246 = vpop.f32.mrf.mxu0
  %v247 = vadd.f32 %v59, %v246
  %248 = vmatprep.mubr.f32.mxu0 0.0
  %249 = vmatmul.mubr.f32.gmra.mxu0 %v97
  %v250 = vpop.f32.mrf.mxu0
  %v251 = vadd.f32 %v55, %v250
  %v252 = vpop.f32.mrf.mxu0
  %v253 = vadd.f32 %v59, %v252
  %254 = vmatprep.mubr.f32.mxu0 0.0
  %255 = vmatmul.mubr.f32.gmra.mxu0 %v100
  %v256 = vpop.f32.mrf.mxu0
  %v257 = vadd.f32 %v55, %v256
  %v258 = vpop.f32.mrf.mxu0
  %v259 = vadd.f32 %v59, %v258
  %260 = vmatprep.mubr.f32.mxu0 0.0
  %261 = vmatmul.mubr.f32.gmra.mxu0 %v103
  %v262 = vpop.f32.mrf.mxu0
  %v263 = vadd.f32 %v55, %v262
  %v264 = vpop.f32.mrf.mxu0
  %v265 = vadd.f32 %v59, %v264
  %266 = vmatprep.mubr.f32.mxu0 0.0
  %267 = vmatmul.mubr.f32.gmra.mxu0 %v106
  %v268 = vpop.f32.mrf.mxu0
  %v269 = vadd.f32 %v55, %v268
  %v270 = vpop.f32.mrf.mxu0
  %v271 = vadd.f32 %v59, %v270
  %272 = vmatprep.mubr.f32.mxu0 0.0
  %273 = vmatmul.mubr.f32.gmra.mxu0 %v109
  %v274 = vpop.f32.mrf.mxu0
  %v275 = vadd.f32 %v55, %v274
  %v276 = vpop.f32.mrf.mxu0
  %v277 = vadd.f32 %v59, %v276
  %278 = vdwg.mxu0
  %v279 = vmax.f32 %v185, 0.0
  %v280 = vmax.f32 %v187, 0.0
  %v281 = vmax.f32 %v191, 0.0
  %v282 = vmax.f32 %v193, 0.0
  %v283 = vmax.f32 %v197, 0.0
  %v284 = vmax.f32 %v199, 0.0
  %v285 = vmax.f32 %v203, 0.0
  %v286 = vmax.f32 %v205, 0.0
  %v287 = vmax.f32 %v209, 0.0
  %v288 = vmax.f32 %v211, 0.0
  %v289 = vmax.f32 %v215, 0.0
  %v290 = vmax.f32 %v217, 0.0
  %v291 = vmax.f32 %v221, 0.0
  %v292 = vmax.f32 %v223, 0.0
  %v293 = vmax.f32 %v227, 0.0
  %v294 = vmax.f32 %v229, 0.0
  %v295 = vmax.f32 %v233, 0.0
  %v296 = vmax.f32 %v235, 0.0
  %v297 = vmax.f32 %v239, 0.0
  %v298 = vmax.f32 %v241, 0.0
  %v299 = vmax.f32 %v245, 0.0
  %v300 = vmax.f32 %v247, 0.0
  %v301 = vmax.f32 %v251, 0.0
  %v302 = vmax.f32 %v253, 0.0
  %v303 = vmax.f32 %v257, 0.0
  %v304 = vmax.f32 %v259, 0.0
  %v305 = vmax.f32 %v263, 0.0
  %v306 = vmax.f32 %v265, 0.0
  %v307 = vmax.f32 %v269, 0.0
  %v308 = vmax.f32 %v271, 0.0
  %v309 = vmax.f32 %v275, 0.0
  %v310 = vmax.f32 %v277, 0.0
  %v311 = vld [vmem:[%s3] sm:$0xff]
  %v312 = vld [vmem:[%s3 + $0x8] sm:$0xff]
  %v313 = vld [vmem:[%s3 + $0x10] sm:$0xff]
  %v314 = vld [vmem:[%s3 + $0x18] sm:$0xff]
  %v315 = vld [vmem:[%s3 + $0x20] sm:$0xff]
  %v316 = vld [vmem:[%s3 + $0x28] sm:$0xff]
  %v317 = vld [vmem:[%s3 + $0x30] sm:$0xff]
  %v318 = vld [vmem:[%s3 + $0x38] sm:$0xff]
  %v319 = vld [vmem:[%s3 + $0x40] sm:$0xff]
  %v320 = vld [vmem:[%s3 + $0x48] sm:$0xff]
  %v321 = vld [vmem:[%s3 + $0x50] sm:$0xff]
  %v322 = vld [vmem:[%s3 + $0x58] sm:$0xff]
  %v323 = vld [vmem:[%s3 + $0x60] sm:$0xff]
  %v324 = vld [vmem:[%s3 + $0x68] sm:$0xff]
  %v325 = vld [vmem:[%s3 + $0x70] sm:$0xff]
  %v326 = vld [vmem:[%s3 + $0x78] sm:$0xff]
  %v327 = vld [vmem:[%s3 + $0x80] sm:$0xff]
  %v328 = vld [vmem:[%s3 + $0x88] sm:$0xff]
  %v329 = vld [vmem:[%s3 + $0x90] sm:$0xff]
  %v330 = vld [vmem:[%s3 + $0x98] sm:$0xff]
  %v331 = vld [vmem:[%s3 + $0xa0] sm:$0xff]
  %v332 = vld [vmem:[%s3 + $0xa8] sm:$0xff]
  %v333 = vld [vmem:[%s3 + $0xb0] sm:$0xff]
  %v334 = vld [vmem:[%s3 + $0xb8] sm:$0xff]
  %v335 = vld [vmem:[%s3 + $0xc0] sm:$0xff]
  %v336 = vld [vmem:[%s3 + $0xc8] sm:$0xff]
  %v337 = vld [vmem:[%s3 + $0xd0] sm:$0xff]
  %v338 = vld [vmem:[%s3 + $0xd8] sm:$0xff]
  %v339 = vld [vmem:[%s3 + $0xe0] sm:$0xff]
  %v340 = vld [vmem:[%s3 + $0xe8] sm:$0xff]
  %v341 = vld [vmem:[%s3 + $0xf0] sm:$0xff]
  %v342 = vld [vmem:[%s3 + $0xf8] sm:$0xff]
  %v343 = vld [vmem:[%s4] sm:$0x1]
  %v345 = vlaneseq
  %v346 = vshrl.u32 %v345, 7
  %v347 = vsub.s32 0, %v346
  %v348 = vrot.slane %v343, %v347
  %350 = vmatprep.subr.mxu0 0.0
  %351 = vmatpush1.msra.mxu0 %v326
  %352 = vmatprep.subr.mxu0 0.0
  %353 = vmatpush1.msra.mxu0 %v325
  %354 = vmatprep.subr.mxu0 0.0
  %355 = vmatpush1.msra.mxu0 %v324
  %356 = vmatprep.subr.mxu0 0.0
  %357 = vmatpush1.msra.mxu0 %v323
  %358 = vmatprep.subr.mxu0 0.0
  %359 = vmatpush1.msra.mxu0 %v322
  %360 = vmatprep.subr.mxu0 0.0
  %361 = vmatpush1.msra.mxu0 %v321
  %362 = vmatprep.subr.mxu0 0.0
  %363 = vmatpush1.msra.mxu0 %v320
  %364 = vmatprep.subr.mxu0 0.0
  %365 = vmatpush1.msra.mxu0 %v319
  %366 = vmatprep.subr.mxu0 0.0
  %367 = vmatpush1.msra.mxu0 %v318
  %368 = vmatprep.subr.mxu0 0.0
  %369 = vmatpush1.msra.mxu0 %v317
  %370 = vmatprep.subr.mxu0 0.0
  %371 = vmatpush1.msra.mxu0 %v316
  %372 = vmatprep.subr.mxu0 0.0
  %373 = vmatpush1.msra.mxu0 %v315
  %374 = vmatprep.subr.mxu0 0.0
  %375 = vmatpush1.msra.mxu0 %v314
  %376 = vmatprep.subr.mxu0 0.0
  %377 = vmatpush1.msra.mxu0 %v313
  %378 = vmatprep.subr.mxu0 0.0
  %379 = vmatpush1.msra.mxu0 %v312
  %380 = vmatprep.subr.mxu0 0.0
  %381 = vmatpush1.msra.mxu0 %v311
  %382 = vmatprep.subr.mxu0 0.0
  %383 = vmatpush2.msra.mxu0 %v342
  %384 = vmatprep.subr.mxu0 0.0
  %385 = vmatpush2.msra.mxu0 %v341
  %386 = vmatprep.subr.mxu0 0.0
  %387 = vmatpush2.msra.mxu0 %v340
  %388 = vmatprep.subr.mxu0 0.0
  %389 = vmatpush2.msra.mxu0 %v339
  %390 = vmatprep.subr.mxu0 0.0
  %391 = vmatpush2.msra.mxu0 %v338
  %392 = vmatprep.subr.mxu0 0.0
  %393 = vmatpush2.msra.mxu0 %v337
  %394 = vmatprep.subr.mxu0 0.0
  %395 = vmatpush2.msra.mxu0 %v336
  %396 = vmatprep.subr.mxu0 0.0
  %397 = vmatpush2.msra.mxu0 %v335
  %398 = vmatprep.subr.mxu0 0.0
  %399 = vmatpush2.msra.mxu0 %v334
  %400 = vmatprep.subr.mxu0 0.0
  %401 = vmatpush2.msra.mxu0 %v333
  %402 = vmatprep.subr.mxu0 0.0
  %403 = vmatpush2.msra.mxu0 %v332
  %404 = vmatprep.subr.mxu0 0.0
  %405 = vmatpush2.msra.mxu0 %v331
  %406 = vmatprep.subr.mxu0 0.0
  %407 = vmatpush2.msra.mxu0 %v330
  %408 = vmatprep.subr.mxu0 0.0
  %409 = vmatpush2.msra.mxu0 %v329
  %410 = vmatprep.subr.mxu0 0.0
  %411 = vmatpush2.msra.mxu0 %v328
  %412 = vmatprep.subr.mxu0 0.0
  %413 = vmatpush2.msra.mxu0 %v327
  %414 = vmatprep.mubr.f32.mxu0 %v280
  %415 = vmatmul.mubr.f32.gmra.mxu0 %v279
  %v416 = vpop.f32.mrf.mxu0
  %v417 = vadd.f32 %v348, %v416
  %v418 = vpop.f32.mrf.mxu0
  %419 = vmatprep.mubr.f32.mxu0 %v282
  %420 = vmatmul.mubr.f32.gmra.mxu0 %v281
  %v421 = vpop.f32.mrf.mxu0
  %v422 = vadd.f32 %v348, %v421
  %v423 = vpop.f32.mrf.mxu0
  %424 = vmatprep.mubr.f32.mxu0 %v284
  %425 = vmatmul.mubr.f32.gmra.mxu0 %v283
  %v426 = vpop.f32.mrf.mxu0
  %v427 = vadd.f32 %v348, %v426
  %v428 = vpop.f32.mrf.mxu0
  %429 = vmatprep.mubr.f32.mxu0 %v286
  %430 = vmatmul.mubr.f32.gmra.mxu0 %v285
  %v431 = vpop.f32.mrf.mxu0
  %v432 = vadd.f32 %v348, %v431
  %v433 = vpop.f32.mrf.mxu0
  %434 = vmatprep.mubr.f32.mxu0 %v288
  %435 = vmatmul.mubr.f32.gmra.mxu0 %v287
  %v436 = vpop.f32.mrf.mxu0
  %v437 = vadd.f32 %v348, %v436
  %v438 = vpop.f32.mrf.mxu0
  %439 = vmatprep.mubr.f32.mxu0 %v290
  %440 = vmatmul.mubr.f32.gmra.mxu0 %v289
  %v441 = vpop.f32.mrf.mxu0
  %v442 = vadd.f32 %v348, %v441
  %v443 = vpop.f32.mrf.mxu0
  %444 = vmatprep.mubr.f32.mxu0 %v292
  %445 = vmatmul.mubr.f32.gmra.mxu0 %v291
  %v446 = vpop.f32.mrf.mxu0
  %v447 = vadd.f32 %v348, %v446
  %v448 = vpop.f32.mrf.mxu0
  %449 = vmatprep.mubr.f32.mxu0 %v294
  %450 = vmatmul.mubr.f32.gmra.mxu0 %v293
  %v451 = vpop.f32.mrf.mxu0
  %v452 = vadd.f32 %v348, %v451
  %v453 = vpop.f32.mrf.mxu0
  %454 = vmatprep.mubr.f32.mxu0 %v296
  %455 = vmatmul.mubr.f32.gmra.mxu0 %v295
  %v456 = vpop.f32.mrf.mxu0
  %v457 = vadd.f32 %v348, %v456
  %v458 = vpop.f32.mrf.mxu0
  %459 = vmatprep.mubr.f32.mxu0 %v298
  %460 = vmatmul.mubr.f32.gmra.mxu0 %v297
  %v461 = vpop.f32.mrf.mxu0
  %v462 = vadd.f32 %v348, %v461
  %v463 = vpop.f32.mrf.mxu0
  %464 = vmatprep.mubr.f32.mxu0 %v300
  %465 = vmatmul.mubr.f32.gmra.mxu0 %v299
  %v466 = vpop.f32.mrf.mxu0
  %v467 = vadd.f32 %v348, %v466
  %v468 = vpop.f32.mrf.mxu0
  %469 = vmatprep.mubr.f32.mxu0 %v302
  %470 = vmatmul.mubr.f32.gmra.mxu0 %v301
  %v471 = vpop.f32.mrf.mxu0
  %v472 = vadd.f32 %v348, %v471
  %v473 = vpop.f32.mrf.mxu0
  %474 = vmatprep.mubr.f32.mxu0 %v304
  %475 = vmatmul.mubr.f32.gmra.mxu0 %v303
  %v476 = vpop.f32.mrf.mxu0
  %v477 = vadd.f32 %v348, %v476
  %v478 = vpop.f32.mrf.mxu0
  %479 = vmatprep.mubr.f32.mxu0 %v306
  %480 = vmatmul.mubr.f32.gmra.mxu0 %v305
  %v481 = vpop.f32.mrf.mxu0
  %v482 = vadd.f32 %v348, %v481
  %v483 = vpop.f32.mrf.mxu0
  %484 = vmatprep.mubr.f32.mxu0 %v308
  %485 = vmatmul.mubr.f32.gmra.mxu0 %v307
  %v486 = vpop.f32.mrf.mxu0
  %v487 = vadd.f32 %v348, %v486
  %v488 = vpop.f32.mrf.mxu0
  %489 = vmatprep.mubr.f32.mxu0 %v310
  %490 = vmatmul.mubr.f32.gmra.mxu0 %v309
  %v491 = vpop.f32.mrf.mxu0
  %v492 = vadd.f32 %v348, %v491
  %v493 = vpop.f32.mrf.mxu0
  %494 = vdwg.mxu0
  %v495 = vmul.f32 %v417, %v417
  %v496 = vmul.f32 %v422, %v422
  %v497 = vmul.f32 %v427, %v427
  %v498 = vmul.f32 %v432, %v432
  %v499 = vmul.f32 %v437, %v437
  %v500 = vmul.f32 %v442, %v442
  %v501 = vmul.f32 %v447, %v447
  %v502 = vmul.f32 %v452, %v452
  %v503 = vmul.f32 %v457, %v457
  %v504 = vmul.f32 %v462, %v462
  %v505 = vmul.f32 %v467, %v467
  %v506 = vmul.f32 %v472, %v472
  %v507 = vmul.f32 %v477, %v477
  %v508 = vmul.f32 %v482, %v482
  %v509 = vmul.f32 %v487, %v487
  %v510 = vmul.f32 %v492, %v492
  %vm511 = vcmask 15360
  %v512 = vsel %vm511, %v495, 0.0
  %513 = vadd.xlane.f32.xlu0 %v512
  %v514 = vpop.xlane.xlu0 %513
  %v515 = vsel %vm511, %v496, 0.0
  %516 = vadd.xlane.f32.xlu0 %v515
  %v517 = vpop.xlane.xlu0 %516
  %v518 = vsel %vm511, %v497, 0.0
  %519 = vadd.xlane.f32.xlu0 %v518
  %v520 = vpop.xlane.xlu0 %519
  %v521 = vsel %vm511, %v498, 0.0
  %522 = vadd.xlane.f32.xlu0 %v521
  %v523 = vpop.xlane.xlu0 %522
  %v524 = vsel %vm511, %v499, 0.0
  %525 = vadd.xlane.f32.xlu0 %v524
  %v526 = vpop.xlane.xlu0 %525
  %v527 = vsel %vm511, %v500, 0.0
  %528 = vadd.xlane.f32.xlu0 %v527
  %v529 = vpop.xlane.xlu0 %528
  %v530 = vsel %vm511, %v501, 0.0
  %531 = vadd.xlane.f32.xlu0 %v530
  %v532 = vpop.xlane.xlu0 %531
  %v533 = vsel %vm511, %v502, 0.0
  %534 = vadd.xlane.f32.xlu0 %v533
  %v535 = vpop.xlane.xlu0 %534
  %v536 = vsel %vm511, %v503, 0.0
  %537 = vadd.xlane.f32.xlu0 %v536
  %v538 = vpop.xlane.xlu0 %537
  %v539 = vsel %vm511, %v504, 0.0
  %540 = vadd.xlane.f32.xlu0 %v539
  %v541 = vpop.xlane.xlu0 %540
  %v542 = vsel %vm511, %v505, 0.0
  %543 = vadd.xlane.f32.xlu0 %v542
  %v544 = vpop.xlane.xlu0 %543
  %v545 = vsel %vm511, %v506, 0.0
  %546 = vadd.xlane.f32.xlu0 %v545
  %v547 = vpop.xlane.xlu0 %546
  %v548 = vsel %vm511, %v507, 0.0
  %549 = vadd.xlane.f32.xlu0 %v548
  %v550 = vpop.xlane.xlu0 %549
  %v551 = vsel %vm511, %v508, 0.0
  %552 = vadd.xlane.f32.xlu0 %v551
  %v553 = vpop.xlane.xlu0 %552
  %v554 = vsel %vm511, %v509, 0.0
  %555 = vadd.xlane.f32.xlu0 %v554
  %v556 = vpop.xlane.xlu0 %555
  %v557 = vsel %vm511, %v510, 0.0
  %558 = vadd.xlane.f32.xlu0 %v557
  %v559 = vpop.xlane.xlu0 %558
  %v560 = vmax.f32 %v514, 1e-24
  %v561 = vmax.f32 %v517, 1e-24
  %v562 = vmax.f32 %v520, 1e-24
  %v563 = vmax.f32 %v523, 1e-24
  %v564 = vmax.f32 %v526, 1e-24
  %v565 = vmax.f32 %v529, 1e-24
  %v566 = vmax.f32 %v532, 1e-24
  %v567 = vmax.f32 %v535, 1e-24
  %v568 = vmax.f32 %v538, 1e-24
  %v569 = vmax.f32 %v541, 1e-24
  %v570 = vmax.f32 %v544, 1e-24
  %v571 = vmax.f32 %v547, 1e-24
  %v572 = vmax.f32 %v550, 1e-24
  %v573 = vmax.f32 %v553, 1e-24
  %v574 = vmax.f32 %v556, 1e-24
  %v575 = vmax.f32 %v559, 1e-24
  %v576 = vrsqrt.pop %v560
  %v577 = vrsqrt.pop %v561
  %v578 = vrsqrt.pop %v562
  %v579 = vrsqrt.pop %v563
  %v580 = vrsqrt.pop %v564
  %v581 = vrsqrt.pop %v565
  %v582 = vrsqrt.pop %v566
  %v583 = vrsqrt.pop %v567
  %v584 = vrsqrt.pop %v568
  %v585 = vrsqrt.pop %v569
  %v586 = vrsqrt.pop %v570
  %v587 = vrsqrt.pop %v571
  %v588 = vrsqrt.pop %v572
  %v589 = vrsqrt.pop %v573
  %v590 = vrsqrt.pop %v574
  %v591 = vrsqrt.pop %v575
  %v592 = vmul.f32 %v514, %v576
  %v593 = vmul.f32 %v517, %v577
  %v594 = vmul.f32 %v520, %v578
  %v595 = vmul.f32 %v523, %v579
  %v596 = vmul.f32 %v526, %v580
  %v597 = vmul.f32 %v529, %v581
  %v598 = vmul.f32 %v532, %v582
  %v599 = vmul.f32 %v535, %v583
  %v600 = vmul.f32 %v538, %v584
  %v601 = vmul.f32 %v541, %v585
  %v602 = vmul.f32 %v544, %v586
  %v603 = vmul.f32 %v547, %v587
  %v604 = vmul.f32 %v550, %v588
  %v605 = vmul.f32 %v553, %v589
  %v606 = vmul.f32 %v556, %v590
  %v607 = vmul.f32 %v559, %v591
  %v608 = vtanh.pop %v592
  %v609 = vtanh.pop %v593
  %v610 = vtanh.pop %v594
  %v611 = vtanh.pop %v595
  %v612 = vtanh.pop %v596
  %v613 = vtanh.pop %v597
  %v614 = vtanh.pop %v598
  %v615 = vtanh.pop %v599
  %v616 = vtanh.pop %v600
  %v617 = vtanh.pop %v601
  %v618 = vtanh.pop %v602
  %v619 = vtanh.pop %v603
  %v620 = vtanh.pop %v604
  %v621 = vtanh.pop %v605
  %v622 = vtanh.pop %v606
  %v623 = vtanh.pop %v607
  %v624 = vmul.f32 %v608, %v576
  %v625 = vmul.f32 %v609, %v577
  %v626 = vmul.f32 %v610, %v578
  %v627 = vmul.f32 %v611, %v579
  %v628 = vmul.f32 %v612, %v580
  %v629 = vmul.f32 %v613, %v581
  %v630 = vmul.f32 %v614, %v582
  %v631 = vmul.f32 %v615, %v583
  %v632 = vmul.f32 %v616, %v584
  %v633 = vmul.f32 %v617, %v585
  %v634 = vmul.f32 %v618, %v586
  %v635 = vmul.f32 %v619, %v587
  %v636 = vmul.f32 %v620, %v588
  %v637 = vmul.f32 %v621, %v589
  %v638 = vmul.f32 %v622, %v590
  %v639 = vmul.f32 %v623, %v591
  %v640 = vmul.f32 %v417, %v624
  %v641 = vmul.f32 %v422, %v625
  %v642 = vmul.f32 %v427, %v626
  %v643 = vmul.f32 %v432, %v627
  %v644 = vmul.f32 %v437, %v628
  %v645 = vmul.f32 %v442, %v629
  %v646 = vmul.f32 %v447, %v630
  %v647 = vmul.f32 %v452, %v631
  %v648 = vmul.f32 %v457, %v632
  %v649 = vmul.f32 %v462, %v633
  %v650 = vmul.f32 %v467, %v634
  %v651 = vmul.f32 %v472, %v635
  %v652 = vmul.f32 %v477, %v636
  %v653 = vmul.f32 %v482, %v637
  %v654 = vmul.f32 %v487, %v638
  %v655 = vmul.f32 %v492, %v639
  %656 = vst.msk [vmem:[%s5] sm:$0xff] %vm511, %v640
  %657 = vst.msk [vmem:[%s5 + $0x8] sm:$0xff] %vm511, %v641
  %658 = vst.msk [vmem:[%s5 + $0x10] sm:$0xff] %vm511, %v642
  %659 = vst.msk [vmem:[%s5 + $0x18] sm:$0xff] %vm511, %v643
  %660 = vst.msk [vmem:[%s5 + $0x20] sm:$0xff] %vm511, %v644
  %661 = vst.msk [vmem:[%s5 + $0x28] sm:$0xff] %vm511, %v645
  %662 = vst.msk [vmem:[%s5 + $0x30] sm:$0xff] %vm511, %v646
  %663 = vst.msk [vmem:[%s5 + $0x38] sm:$0xff] %vm511, %v647
  %664 = vst.msk [vmem:[%s5 + $0x40] sm:$0xff] %vm511, %v648
  %665 = vst.msk [vmem:[%s5 + $0x48] sm:$0xff] %vm511, %v649
  %666 = vst.msk [vmem:[%s5 + $0x50] sm:$0xff] %vm511, %v650
  %667 = vst.msk [vmem:[%s5 + $0x58] sm:$0xff] %vm511, %v651
  %668 = vst.msk [vmem:[%s5 + $0x60] sm:$0xff] %vm511, %v652
  %669 = vst.msk [vmem:[%s5 + $0x68] sm:$0xff] %vm511, %v653
  %670 = vst.msk [vmem:[%s5 + $0x70] sm:$0xff] %vm511, %v654
  %671 = vst.msk [vmem:[%s5 + $0x78] sm:$0xff] %vm511, %v655
  // Predicated region
  $region22: #{encoder_forward.1} parent=0 // pred_check
    _
  $region23: #{encoder_forward.1} parent=0 // pred_check_branch
    %673 = sbr.rel (0) target = $region25
  $region24: #{encoder_forward.1} parent=0 // pred_region
    _
  $region25: #{encoder_forward.1} parent=0 // pred_fallthru
    _
  // Predicated region
  $region26: #{encoder_forward.1} parent=0 // pred_check
    _
  $region27: #{encoder_forward.1} parent=0 // pred_check_branch
    %675 = sbr.rel (0) target = $region29
  $region28: #{encoder_forward.1} parent=0 // pred_region
    _
  $region29: #{encoder_forward.1} parent=0 // pred_fallthru
    _

</llo_original>
